<compile_context>
chip_gen: v7x
topology: tpu7x:2x2x1
jax: 0.10.0
libtpu: 0.0.40
codegen_flags: <defaults>
</compile_context>

<pallas_src>
import jax
import jax.numpy as jnp
from jax.experimental import pallas as pl
from jax.experimental.pallas import tpu as pltpu


def mlp_kernel(x_ref, w1_ref, b1_ref, w2_ref, b2_ref, w3_ref, b3_ref, o_ref):
    # All operands are in packed (block-diagonal) form:
    #   x:(tbp, r*F)  w1:(r*F, r*16)  w2:(r*16, r*8)  w3:(r*8, r*2)  o:(tbp, r*2)
    h1 = jnp.dot(x_ref[...], w1_ref[...], preferred_element_type=jnp.float32)
    h1 = jnp.maximum(h1 + b1_ref[...], 0.0)          # lane-dense (tbp, r*16)
    h2 = jnp.dot(h1, w2_ref[...], preferred_element_type=jnp.float32)
    h2 = jnp.maximum(h2 + b2_ref[...], 0.0)          # (tbp, r*8)
    out = jnp.dot(h2, w3_ref[...], preferred_element_type=jnp.float32)
    o_ref[...] = (out + b3_ref[...]).astype(o_ref.dtype)


def _pick_pack_factor(input_size):
    # Pack r batch rows per packed row so the fc1 contraction K = r*F reaches
    # ~256 (full MXU ingest width on v6e/v7x; two passes on v5e's 128-wide MXU).
    r = 1
    while r < 8 and r * input_size < 256:
        r *= 2
    return r


def _block_diag(w, r):
    """(K, N) -> (r*K, r*N) with `w` repeated along the block diagonal."""
    k, n = w.shape
    eye = jnp.eye(r, dtype=w.dtype)
    return jnp.einsum("ij,kn->ikjn", eye, w).reshape(r * k, r * n)


def pack_params(params):
    """Build block-diagonal weights once (outside the kernel). Numerically this
    is the same f32 forward pass: the added off-diagonal terms are exact zeros."""
    w1, b1, w2, b2, w3, b3 = params
    r = _pick_pack_factor(w1.shape[0])
    packed = (
        _block_diag(w1, r), jnp.tile(b1, (1, r)),
        _block_diag(w2, r), jnp.tile(b2, (1, r)),
        _block_diag(w3, r), jnp.tile(b3, (1, r)),
    )
    return r, packed


def simple_classifier(x, packed_params, r):
    """Forward pass. x: (B, F) float32 -> (B, 2) float32."""
    W1, B1, W2, B2, W3, B3 = packed_params
    B, F = x.shape
    rF = r * F
    n_out = 2

    def lane_pad(n):  # VMEM lane padding of the minor dim
        return -(-n // 128) * 128

    # ---------------- per-generation-safe VMEM budget & batch tile ----------
    phys_vmem = 64 << 20                       # v7x floor; v5e/v6e have 128 MiB
    try:
        phys_vmem = pltpu.get_tpu_info().vmem_capacity_bytes
    except Exception:
        pass
    budget = min(phys_vmem // 2, 48 << 20)     # keep headroom under physical

    # Conservative f32 bytes per packed batch row resident in VMEM:
    #   x tile (double-buffered) + out tile (double-buffered)
    #   + h1/h2 intermediates (x2 for non-in-place temporaries)
    per_row = 4 * (2 * lane_pad(rF) + 2 * lane_pad(n_out * r)
                   + 2 * lane_pad(16 * r) + 2 * lane_pad(8 * r))
    weight_bytes = 2 * 4 * (rF * lane_pad(16 * r) + 16 * r * lane_pad(8 * r)
                            + 8 * r * lane_pad(n_out * r) + 3 * 128)
    tbp_cap = max(8, (budget - weight_bytes - (1 << 20)) // per_row)
    tbp_cap -= tbp_cap % 8

    n_packed = -(-B // r)                      # packed rows of r*F elements
    # Aim for >= ~8 grid steps when there is enough data (keeps both v7x cores
    # busy with pipelined steps), but never below 512 packed rows per tile so
    # per-step overhead stays amortized.
    tbp = min(tbp_cap, max(512, -(-n_packed // 8)))
    tbp -= tbp % 8
    tbp = max(tbp, 8)
    if tbp >= n_packed:
        tbp, n_padded = n_packed, n_packed     # single full-extent tile
    else:
        n_padded = -(-n_packed // tbp) * tbp   # pad: no ragged tail tile

    B_padded = n_padded * r
    if B_padded != B:
        x = jnp.pad(x, ((0, B_padded - B), (0, 0)))
    x_packed = x.reshape(n_padded, rF)         # free row-major reshape

    grid = (n_padded // tbp,)
    invariant = lambda i: (0, 0)               # weights: DMA once, stay in VMEM

    flops = 2 * B_padded * (F * 16 + 16 * 8 + 8 * n_out)
    bytes_accessed = 4 * (B_padded * (F + n_out)
                          + W1.size + B1.size + W2.size + B2.size
                          + W3.size + B3.size)

    out_packed = pl.pallas_call(
        mlp_kernel,
        grid=grid,
        in_specs=[
            pl.BlockSpec((tbp, rF), lambda i: (i, 0)),     # x tile, pipelined
            pl.BlockSpec(W1.shape, invariant),
            pl.BlockSpec(B1.shape, invariant),
            pl.BlockSpec(W2.shape, invariant),
            pl.BlockSpec(B2.shape, invariant),
            pl.BlockSpec(W3.shape, invariant),
            pl.BlockSpec(B3.shape, invariant),
        ],
        out_specs=pl.BlockSpec((tbp, n_out * r), lambda i: (i, 0)),
        out_shape=jax.ShapeDtypeStruct((n_padded, n_out * r), jnp.float32),
        compiler_params=pltpu.CompilerParams(
            dimension_semantics=("parallel",),
            vmem_limit_bytes=int(min(budget + (16 << 20), phys_vmem * 3 // 4)),
        ),
        cost_estimate=pl.CostEstimate(
            flops=int(flops), transcendentals=0,
            bytes_accessed=int(bytes_accessed)),
    )(x_packed, W1, B1, W2, B2, W3, B3)

    # (n_padded, 2r) -> (B_padded, 2) is a metadata-only reshape (no HBM pass),
    # then drop the padding rows.
    return out_packed.reshape(B_padded, n_out)[:B]


def init_params(key, input_size):
    # nn.Linear-style uniform init; weights stored (in, out), biases (1, out).
    k = jax.random.split(key, 6)

    def uniform(kk, shape, fan_in):
        bound = 1.0 / float(fan_in) ** 0.5
        return jax.random.uniform(kk, shape, jnp.float32, -bound, bound)

    w1 = uniform(k[0], (input_size, 16), input_size)
    b1 = uniform(k[1], (1, 16), input_size)
    w2 = uniform(k[2], (16, 8), 16)
    b2 = uniform(k[3], (1, 8), 16)
    w3 = uniform(k[4], (8, 2), 8)
    b3 = uniform(k[5], (1, 2), 8)
    return (w1, b1, w2, b2, w3, b3)


if __name__ == "__main__":
    key = jax.random.PRNGKey(0)
    k_x, k_p = jax.random.split(key)

    batch, input_size = 8, 32
    x = jax.random.normal(k_x, (batch, input_size), dtype=jnp.float32)
    params = init_params(k_p, input_size)
    r, packed = pack_params(params)          # block-diagonal weights, built once

    out = simple_classifier(x, packed, r)
    out = jax.block_until_ready(out)

    # Pure-JAX reference of the same forward pass.
    w1, b1, w2, b2, w3, b3 = params
    ref = jnp.maximum(x @ w1 + b1, 0.0)
    ref = jnp.maximum(ref @ w2 + b2, 0.0)
    ref = ref @ w3 + b3
    assert out.shape == (batch, 2)
    assert jnp.allclose(out, ref, atol=1e-5, rtol=1e-5)

    print("KERNEL_OK")
</pallas_src>

<mosaic_0001>
module attributes {stable_mosaic.version = 11 : i64} {
  func.func @mlp_kernel(%arg0: i32, %arg1: memref<1x256xf32, #tpu.memory_space<vmem>>, %arg2: memref<256x128xf32, #tpu.memory_space<vmem>>, %arg3: memref<1x128xf32, #tpu.memory_space<vmem>>, %arg4: memref<128x64xf32, #tpu.memory_space<vmem>>, %arg5: memref<1x64xf32, #tpu.memory_space<vmem>>, %arg6: memref<64x16xf32, #tpu.memory_space<vmem>>, %arg7: memref<1x16xf32, #tpu.memory_space<vmem>>, %arg8: memref<1x16xf32, #tpu.memory_space<vmem>>) attributes {dimension_semantics = [#tpu.dimension_semantics<parallel>], iteration_bounds = array<i64: 1>, scalar_prefetch = 0 : i64, scratch_operands = 0 : i64, tpu.core_type = #tpu.core_type<tc>, window_params = [{transform_indices = @transform_0, window_bounds = array<i64: 1, 256>}, {pipeline_mode = #tpu.pipeline_mode<synchronous>, transform_indices = @transform_1, window_bounds = array<i64: 256, 128>}, {pipeline_mode = #tpu.pipeline_mode<synchronous>, transform_indices = @transform_2, window_bounds = array<i64: 1, 128>}, {pipeline_mode = #tpu.pipeline_mode<synchronous>, transform_indices = @transform_3, window_bounds = array<i64: 128, 64>}, {pipeline_mode = #tpu.pipeline_mode<synchronous>, transform_indices = @transform_4, window_bounds = array<i64: 1, 64>}, {pipeline_mode = #tpu.pipeline_mode<synchronous>, transform_indices = @transform_5, window_bounds = array<i64: 64, 16>}, {pipeline_mode = #tpu.pipeline_mode<synchronous>, transform_indices = @transform_6, window_bounds = array<i64: 1, 16>}, {transform_indices = @transform_7, window_bounds = array<i64: 1, 16>}]} {
    %c0 = arith.constant 0 : index
    %c0_0 = arith.constant 0 : index
    %0 = vector.load %arg1[%c0, %c0_0] : memref<1x256xf32, #tpu.memory_space<vmem>>, vector<1x256xf32>
    %c0_1 = arith.constant 0 : index
    %c0_2 = arith.constant 0 : index
    %1 = vector.load %arg2[%c0_1, %c0_2] : memref<256x128xf32, #tpu.memory_space<vmem>>, vector<256x128xf32>
    %cst = arith.constant dense<0.000000e+00> : vector<1x128xf32>
    %2 = tpu.matmul %0, %1, %cst {dimension_numbers = #tpu.dot_dimension_numbers<[1], [0], [0], [1], [0, 0, 1, 1], [], []>} : vector<1x256xf32>, vector<256x128xf32>, vector<1x128xf32> -> vector<1x128xf32>
    %c0_3 = arith.constant 0 : index
    %c0_4 = arith.constant 0 : index
    %3 = vector.load %arg3[%c0_3, %c0_4] : memref<1x128xf32, #tpu.memory_space<vmem>>, vector<1x128xf32>
    %4 = arith.addf %2, %3 : vector<1x128xf32>
    %cst_5 = arith.constant 0.000000e+00 : f32
    %5 = vector.broadcast %cst_5 : f32 to vector<1x128xf32>
    %6 = arith.maximumf %4, %5 : vector<1x128xf32>
    %c0_6 = arith.constant 0 : index
    %c0_7 = arith.constant 0 : index
    %7 = vector.load %arg4[%c0_6, %c0_7] : memref<128x64xf32, #tpu.memory_space<vmem>>, vector<128x64xf32>
    %cst_8 = arith.constant dense<0.000000e+00> : vector<1x64xf32>
    %8 = tpu.matmul %6, %7, %cst_8 {dimension_numbers = #tpu.dot_dimension_numbers<[1], [0], [0], [1], [0, 0, 1, 1], [], []>} : vector<1x128xf32>, vector<128x64xf32>, vector<1x64xf32> -> vector<1x64xf32>
    %c0_9 = arith.constant 0 : index
    %c0_10 = arith.constant 0 : index
    %9 = vector.load %arg5[%c0_9, %c0_10] : memref<1x64xf32, #tpu.memory_space<vmem>>, vector<1x64xf32>
    %10 = arith.addf %8, %9 : vector<1x64xf32>
    %cst_11 = arith.constant 0.000000e+00 : f32
    %11 = vector.broadcast %cst_11 : f32 to vector<1x64xf32>
    %12 = arith.maximumf %10, %11 : vector<1x64xf32>
    %c0_12 = arith.constant 0 : index
    %c0_13 = arith.constant 0 : index
    %13 = vector.load %arg6[%c0_12, %c0_13] : memref<64x16xf32, #tpu.memory_space<vmem>>, vector<64x16xf32>
    %cst_14 = arith.constant dense<0.000000e+00> : vector<1x16xf32>
    %14 = tpu.matmul %12, %13, %cst_14 {dimension_numbers = #tpu.dot_dimension_numbers<[1], [0], [0], [1], [0, 0, 1, 1], [], []>} : vector<1x64xf32>, vector<64x16xf32>, vector<1x16xf32> -> vector<1x16xf32>
    %c0_15 = arith.constant 0 : index
    %c0_16 = arith.constant 0 : index
    %15 = vector.load %arg7[%c0_15, %c0_16] : memref<1x16xf32, #tpu.memory_space<vmem>>, vector<1x16xf32>
    %16 = arith.addf %14, %15 : vector<1x16xf32>
    %c0_17 = arith.constant 0 : index
    %c0_18 = arith.constant 0 : index
    %17 = vector.load %arg8[%c0_17, %c0_18] : memref<1x16xf32, #tpu.memory_space<vmem>>, vector<1x16xf32>
    tpu.vector_store %arg8[%c0_17, %c0_18], %16 {strides = array<i32>} : memref<1x16xf32, #tpu.memory_space<vmem>>, vector<1x16xf32>,
    return
  }
  func.func @transform_0(%arg0: i32) -> (i32, i32) {
    %c0_i32 = arith.constant 0 : i32
    %c0_i32_0 = arith.constant 0 : i32
    return %arg0, %c0_i32 : i32, i32
  }
  func.func @transform_1(%arg0: i32) -> (i32, i32) {
    %c0_i32 = arith.constant 0 : i32
    %c0_i32_0 = arith.constant 0 : i32
    %c0_i32_1 = arith.constant 0 : i32
    return %c0_i32, %c0_i32_0 : i32, i32
  }
  func.func @transform_2(%arg0: i32) -> (i32, i32) {
    %c0_i32 = arith.constant 0 : i32
    %c0_i32_0 = arith.constant 0 : i32
    %c0_i32_1 = arith.constant 0 : i32
    return %c0_i32, %c0_i32_0 : i32, i32
  }
  func.func @transform_3(%arg0: i32) -> (i32, i32) {
    %c0_i32 = arith.constant 0 : i32
    %c0_i32_0 = arith.constant 0 : i32
    %c0_i32_1 = arith.constant 0 : i32
    return %c0_i32, %c0_i32_0 : i32, i32
  }
  func.func @transform_4(%arg0: i32) -> (i32, i32) {
    %c0_i32 = arith.constant 0 : i32
    %c0_i32_0 = arith.constant 0 : i32
    %c0_i32_1 = arith.constant 0 : i32
    return %c0_i32, %c0_i32_0 : i32, i32
  }
  func.func @transform_5(%arg0: i32) -> (i32, i32) {
    %c0_i32 = arith.constant 0 : i32
    %c0_i32_0 = arith.constant 0 : i32
    %c0_i32_1 = arith.constant 0 : i32
    return %c0_i32, %c0_i32_0 : i32, i32
  }
  func.func @transform_6(%arg0: i32) -> (i32, i32) {
    %c0_i32 = arith.constant 0 : i32
    %c0_i32_0 = arith.constant 0 : i32
    %c0_i32_1 = arith.constant 0 : i32
    return %c0_i32, %c0_i32_0 : i32, i32
  }
  func.func @transform_7(%arg0: i32) -> (i32, i32) {
    %c0_i32 = arith.constant 0 : i32
    %c0_i32_0 = arith.constant 0 : i32
    return %arg0, %c0_i32 : i32, i32
  }
}

</mosaic_0001>

<llo_original>
// kernel: tpu_custom_call.1
$region0: #{tpu_custom_call.1}
  #allocation0 [shape = 'u32[]', space=smem, size = 0x4, offset = 0x4, fixed_abs, tag = 'smem constant byte address 0x4 - core index']
  #allocation1 [shape = 'u32[144,128]{1,0:T(1,128)}', space=vmem, size = 0x12000, scoped, tag = 'internal scratch']
  %s0 = inlined_call_operand.vmem [shape: f32[1,256], index: 0, kind: input, shape index: {}]
  %s1 = inlined_call_operand.vmem [shape: f32[256,128], index: 1, kind: input, shape index: {}]
  %s2 = inlined_call_operand.vmem [shape: f32[1,128], index: 2, kind: input, shape index: {}]
  %s3 = inlined_call_operand.vmem [shape: f32[128,64], index: 3, kind: input, shape index: {}]
  %s4 = inlined_call_operand.vmem [shape: f32[1,64], index: 4, kind: input, shape index: {}]
  %s5 = inlined_call_operand.vmem [shape: f32[64,16], index: 5, kind: input, shape index: {}]
  %s6 = inlined_call_operand.vmem [shape: f32[1,16], index: 6, kind: input, shape index: {}]
  %s7 = inlined_call_operand.hbm [shape: f32[1,16], index: 7, kind: output, shape index: {}]
  %s8 = sld [smem:[#allocation0]]
  $region38: #{tpu_custom_call.1} parent=0
    _
  %s10 = ssub.s32 1, %s8
  %s11 = scalar_select 0, %s10, %s8
  $region1: #{tpu_custom_call.1} parent=0
    #allocation2 [shape = 'u8[512]{0}', space=vmem, size = 0x400, scoped, tag = 'output window, operand 0, single buffered']
    #allocation3 [shape = 's32[1]{0}', space=sflag, size = 0x4, scoped, tag = 'scoped memory for tpu_custom_call.1']
    %12 = vsyncpa [#allocation3], 0
    // Predicated region
    $region2: #{tpu_custom_call.1} parent=1 // pred_check
      _
    $region3: #{tpu_custom_call.1} parent=1 // pred_check_branch
      %14 = sbr.rel (0) target = $region5
    $region4: #{tpu_custom_call.1} parent=1 // pred_region
      _
    $region5: #{tpu_custom_call.1} parent=1 // pred_fallthru
      _
    // Predicated region
    $region6: #{tpu_custom_call.1} parent=1 // pred_check
      _
    $region7: #{tpu_custom_call.1} parent=1 // pred_check_branch
      %16 = sbr.rel (0) target = $region9
    $region8: #{tpu_custom_call.1} parent=1 // pred_region
      _
    $region9: #{tpu_custom_call.1} parent=1 // pred_fallthru
      _
    // Predicated region
    $region10: #{tpu_custom_call.1} parent=1 // pred_check
      _
    $region11: #{tpu_custom_call.1} parent=1 // pred_check_branch
      %18 = sbr.rel (0) target = $region13
    $region12: #{tpu_custom_call.1} parent=1 // pred_region
      _
    $region13: #{tpu_custom_call.1} parent=1 // pred_fallthru
      _
    // Predicated region
    $region14: #{tpu_custom_call.1} parent=1 // pred_check
      _
    $region15: #{tpu_custom_call.1} parent=1 // pred_check_branch
      %20 = sbr.rel (0) target = $region17
    $region16: #{tpu_custom_call.1} parent=1 // pred_region
      _
    $region17: #{tpu_custom_call.1} parent=1 // pred_fallthru
      _
    // Predicated region
    $region18: #{tpu_custom_call.1} parent=1 // pred_check
      _
    $region19: #{tpu_custom_call.1} parent=1 // pred_check_branch
      %22 = sbr.rel (0) target = $region21
    $region20: #{tpu_custom_call.1} parent=1 // pred_region
      _
    $region21: #{tpu_custom_call.1} parent=1 // pred_fallthru
      _
    // Predicated region
    $region22: #{tpu_custom_call.1} parent=1 // pred_check
      _
    $region23: #{tpu_custom_call.1} parent=1 // pred_check_branch
      %24 = sbr.rel (0) target = $region25
    $region24: #{tpu_custom_call.1} parent=1 // pred_region
      _
    $region25: #{tpu_custom_call.1} parent=1 // pred_fallthru
      _
    // Predicated region
    $region26: #{tpu_custom_call.1} parent=1 // pred_check
      _
    $region27: #{tpu_custom_call.1} parent=1 // pred_check_branch
      %26 = sbr.rel (0) target = $region29
    $region28: #{tpu_custom_call.1} parent=1 // pred_region
      _
    $region29: #{tpu_custom_call.1} parent=1 // pred_fallthru
      _
    %v27 = vld [vmem:[%s0] sm:$0x3]
    %v28 = vld [vmem:[%s1] sm:$0xff]
    %v29 = vld [vmem:[%s1 + $0x8] sm:$0xff]
    %v30 = vld [vmem:[%s1 + $0x10] sm:$0xff]
    %v31 = vld [vmem:[%s1 + $0x18] sm:$0xff]
    %v32 = vld [vmem:[%s1 + $0x20] sm:$0xff]
    %v33 = vld [vmem:[%s1 + $0x28] sm:$0xff]
    %v34 = vld [vmem:[%s1 + $0x30] sm:$0xff]
    %v35 = vld [vmem:[%s1 + $0x38] sm:$0xff]
    %v36 = vld [vmem:[%s1 + $0x40] sm:$0xff]
    %v37 = vld [vmem:[%s1 + $0x48] sm:$0xff]
    %v38 = vld [vmem:[%s1 + $0x50] sm:$0xff]
    %v39 = vld [vmem:[%s1 + $0x58] sm:$0xff]
    %v40 = vld [vmem:[%s1 + $0x60] sm:$0xff]
    %v41 = vld [vmem:[%s1 + $0x68] sm:$0xff]
    %v42 = vld [vmem:[%s1 + $0x70] sm:$0xff]
    %v43 = vld [vmem:[%s1 + $0x78] sm:$0xff]
    %v44 = vld [vmem:[%s1 + $0x80] sm:$0xff]
    %v45 = vld [vmem:[%s1 + $0x88] sm:$0xff]
    %v46 = vld [vmem:[%s1 + $0x90] sm:$0xff]
    %v47 = vld [vmem:[%s1 + $0x98] sm:$0xff]
    %v48 = vld [vmem:[%s1 + $0xa0] sm:$0xff]
    %v49 = vld [vmem:[%s1 + $0xa8] sm:$0xff]
    %v50 = vld [vmem:[%s1 + $0xb0] sm:$0xff]
    %v51 = vld [vmem:[%s1 + $0xb8] sm:$0xff]
    %v52 = vld [vmem:[%s1 + $0xc0] sm:$0xff]
    %v53 = vld [vmem:[%s1 + $0xc8] sm:$0xff]
    %v54 = vld [vmem:[%s1 + $0xd0] sm:$0xff]
    %v55 = vld [vmem:[%s1 + $0xd8] sm:$0xff]
    %v56 = vld [vmem:[%s1 + $0xe0] sm:$0xff]
    %v57 = vld [vmem:[%s1 + $0xe8] sm:$0xff]
    %v58 = vld [vmem:[%s1 + $0xf0] sm:$0xff]
    %v59 = vld [vmem:[%s1 + $0xf8] sm:$0xff]
    %v60 = vld [vmem:[%s2] sm:$0x1]
    %v62 = vlaneseq
    %v63 = vshrl.u32 %v62, 7
    %v64 = vsub.s32 0, %v63
    %v65 = vrot.slane %v27, %v64
    %v66 = vlaneseq
    %v67 = vshrl.u32 %v66, 7
    %v68 = vsub.s32 1, %v67
    %v69 = vrot.slane %v27, %v68
    %72 = vmatprep.subr.mxu0 0.0
    %73 = vmatpush1.msra.mxu0 %v28
    %74 = vmatprep.subr.mxu0 0.0
    %75 = vmatpush1.msra.mxu0 %v29
    %76 = vmatprep.subr.mxu0 0.0
    %77 = vmatpush1.msra.mxu0 %v30
    %78 = vmatprep.subr.mxu0 0.0
    %79 = vmatpush1.msra.mxu0 %v31
    %80 = vmatprep.subr.mxu0 0.0
    %81 = vmatpush1.msra.mxu0 %v32
    %82 = vmatprep.subr.mxu0 0.0
    %83 = vmatpush1.msra.mxu0 %v33
    %84 = vmatprep.subr.mxu0 0.0
    %85 = vmatpush1.msra.mxu0 %v34
    %86 = vmatprep.subr.mxu0 0.0
    %87 = vmatpush1.msra.mxu0 %v35
    %88 = vmatprep.subr.mxu0 0.0
    %89 = vmatpush1.msra.mxu0 %v36
    %90 = vmatprep.subr.mxu0 0.0
    %91 = vmatpush1.msra.mxu0 %v37
    %92 = vmatprep.subr.mxu0 0.0
    %93 = vmatpush1.msra.mxu0 %v38
    %94 = vmatprep.subr.mxu0 0.0
    %95 = vmatpush1.msra.mxu0 %v39
    %96 = vmatprep.subr.mxu0 0.0
    %97 = vmatpush1.msra.mxu0 %v40
    %98 = vmatprep.subr.mxu0 0.0
    %99 = vmatpush1.msra.mxu0 %v41
    %100 = vmatprep.subr.mxu0 0.0
    %101 = vmatpush1.msra.mxu0 %v42
    %102 = vmatprep.subr.mxu0 0.0
    %103 = vmatpush1.msra.mxu0 %v43
    %104 = vmatprep.subr.mxu0 0.0
    %105 = vmatpush1.msra.mxu0 %v44
    %106 = vmatprep.subr.mxu0 0.0
    %107 = vmatpush1.msra.mxu0 %v45
    %108 = vmatprep.subr.mxu0 0.0
    %109 = vmatpush1.msra.mxu0 %v46
    %110 = vmatprep.subr.mxu0 0.0
    %111 = vmatpush1.msra.mxu0 %v47
    %112 = vmatprep.subr.mxu0 0.0
    %113 = vmatpush1.msra.mxu0 %v48
    %114 = vmatprep.subr.mxu0 0.0
    %115 = vmatpush1.msra.mxu0 %v49
    %116 = vmatprep.subr.mxu0 0.0
    %117 = vmatpush1.msra.mxu0 %v50
    %118 = vmatprep.subr.mxu0 0.0
    %119 = vmatpush1.msra.mxu0 %v51
    %120 = vmatprep.subr.mxu0 0.0
    %121 = vmatpush1.msra.mxu0 %v52
    %122 = vmatprep.subr.mxu0 0.0
    %123 = vmatpush1.msra.mxu0 %v53
    %124 = vmatprep.subr.mxu0 0.0
    %125 = vmatpush1.msra.mxu0 %v54
    %126 = vmatprep.subr.mxu0 0.0
    %127 = vmatpush1.msra.mxu0 %v55
    %128 = vmatprep.subr.mxu0 0.0
    %129 = vmatpush1.msra.mxu0 %v56
    %130 = vmatprep.subr.mxu0 0.0
    %131 = vmatpush1.msra.mxu0 %v57
    %132 = vmatprep.subr.mxu0 0.0
    %133 = vmatpush1.msra.mxu0 %v58
    %134 = vmatprep.subr.mxu0 0.0
    %135 = vmatpush1.msra.mxu0 %v59
    %136 = vmatprep.mubr.f32.mxu0 %v69
    %137 = vmatmul.mubr.f32.gmra.mrb[0].mxu0 %v65
    %v138 = vpop.f32.mrb[0].mxu0
    %v139 = vadd.f32 %v60, %v138
    %v140 = vpop.f32.mrb[0].mxu0
    %141 = vdwg.mxu0
    %v142 = vmax.f32 %v139, 0.0
    %v143 = vld [vmem:[%s3] sm:$0xff]
    %v144 = vld [vmem:[%s3 + $0x8] sm:$0xff]
    %v145 = vld [vmem:[%s3 + $0x10] sm:$0xff]
    %v146 = vld [vmem:[%s3 + $0x18] sm:$0xff]
    %v147 = vld [vmem:[%s3 + $0x20] sm:$0xff]
    %v148 = vld [vmem:[%s3 + $0x28] sm:$0xff]
    %v149 = vld [vmem:[%s3 + $0x30] sm:$0xff]
    %v150 = vld [vmem:[%s3 + $0x38] sm:$0xff]
    %v151 = vld [vmem:[%s3 + $0x40] sm:$0xff]
    %v152 = vld [vmem:[%s3 + $0x48] sm:$0xff]
    %v153 = vld [vmem:[%s3 + $0x50] sm:$0xff]
    %v154 = vld [vmem:[%s3 + $0x58] sm:$0xff]
    %v155 = vld [vmem:[%s3 + $0x60] sm:$0xff]
    %v156 = vld [vmem:[%s3 + $0x68] sm:$0xff]
    %v157 = vld [vmem:[%s3 + $0x70] sm:$0xff]
    %v158 = vld [vmem:[%s3 + $0x78] sm:$0xff]
    %v159 = vld [vmem:[%s4] sm:$0x1]
    %160 = vmatprep.subr.mxu0 0.0
    %161 = vmatpush1.msra.mxu0 %v143
    %162 = vmatprep.subr.mxu0 0.0
    %163 = vmatpush1.msra.mxu0 %v144
    %164 = vmatprep.subr.mxu0 0.0
    %165 = vmatpush1.msra.mxu0 %v145
    %166 = vmatprep.subr.mxu0 0.0
    %167 = vmatpush1.msra.mxu0 %v146
    %168 = vmatprep.subr.mxu0 0.0
    %169 = vmatpush1.msra.mxu0 %v147
    %170 = vmatprep.subr.mxu0 0.0
    %171 = vmatpush1.msra.mxu0 %v148
    %172 = vmatprep.subr.mxu0 0.0
    %173 = vmatpush1.msra.mxu0 %v149
    %174 = vmatprep.subr.mxu0 0.0
    %175 = vmatpush1.msra.mxu0 %v150
    %176 = vmatprep.subr.mxu0 0.0
    %177 = vmatpush1.msra.mxu0 %v151
    %178 = vmatprep.subr.mxu0 0.0
    %179 = vmatpush1.msra.mxu0 %v152
    %180 = vmatprep.subr.mxu0 0.0
    %181 = vmatpush1.msra.mxu0 %v153
    %182 = vmatprep.subr.mxu0 0.0
    %183 = vmatpush1.msra.mxu0 %v154
    %184 = vmatprep.subr.mxu0 0.0
    %185 = vmatpush1.msra.mxu0 %v155
    %186 = vmatprep.subr.mxu0 0.0
    %187 = vmatpush1.msra.mxu0 %v156
    %188 = vmatprep.subr.mxu0 0.0
    %189 = vmatpush1.msra.mxu0 %v157
    %190 = vmatprep.subr.mxu0 0.0
    %191 = vmatpush1.msra.mxu0 %v158
    %192 = vmatprep.subr.mxu0 0.0
    %193 = vmatpush1.msra.mxu0 0.0
    %194 = vmatprep.subr.mxu0 0.0
    %195 = vmatpush1.msra.mxu0 0.0
    %196 = vmatprep.subr.mxu0 0.0
    %197 = vmatpush1.msra.mxu0 0.0
    %198 = vmatprep.subr.mxu0 0.0
    %199 = vmatpush1.msra.mxu0 0.0
    %200 = vmatprep.subr.mxu0 0.0
    %201 = vmatpush1.msra.mxu0 0.0
    %202 = vmatprep.subr.mxu0 0.0
    %203 = vmatpush1.msra.mxu0 0.0
    %204 = vmatprep.subr.mxu0 0.0
    %205 = vmatpush1.msra.mxu0 0.0
    %206 = vmatprep.subr.mxu0 0.0
    %207 = vmatpush1.msra.mxu0 0.0
    %208 = vmatprep.subr.mxu0 0.0
    %209 = vmatpush1.msra.mxu0 0.0
    %210 = vmatprep.subr.mxu0 0.0
    %211 = vmatpush1.msra.mxu0 0.0
    %212 = vmatprep.subr.mxu0 0.0
    %213 = vmatpush1.msra.mxu0 0.0
    %214 = vmatprep.subr.mxu0 0.0
    %215 = vmatpush1.msra.mxu0 0.0
    %216 = vmatprep.subr.mxu0 0.0
    %217 = vmatpush1.msra.mxu0 0.0
    %218 = vmatprep.subr.mxu0 0.0
    %219 = vmatpush1.msra.mxu0 0.0
    %220 = vmatprep.subr.mxu0 0.0
    %221 = vmatpush1.msra.mxu0 0.0
    %222 = vmatprep.subr.mxu0 0.0
    %223 = vmatpush1.msra.mxu0 0.0
    %224 = vmatprep.mubr.f32.mxu0 0.0
    %225 = vmatmul.mubr.f32.gmra.mrb[0].mxu0 %v142
    %v226 = vpop.f32.mrb[0].mxu0
    %v227 = vadd.f32 %v159, %v226
    %v228 = vpop.f32.mrb[0].mxu0
    %229 = vdwg.mxu0
    %v230 = vmax.f32 %v227, 0.0
    %v231 = vld [vmem:[%s5] sm:$0xff]
    %v232 = vld [vmem:[%s5 + $0x8] sm:$0xff]
    %v233 = vld [vmem:[%s5 + $0x10] sm:$0xff]
    %v234 = vld [vmem:[%s5 + $0x18] sm:$0xff]
    %v235 = vld [vmem:[%s5 + $0x20] sm:$0xff]
    %v236 = vld [vmem:[%s5 + $0x28] sm:$0xff]
    %v237 = vld [vmem:[%s5 + $0x30] sm:$0xff]
    %v238 = vld [vmem:[%s5 + $0x38] sm:$0xff]
    %v239 = vld [vmem:[%s6] sm:$0x1]
    %vm240 = vcmask 523264
    %v242 = vsel %vm240, %v230, 0
    %244 = vmatprep.subr.mxu0 0.0
    %245 = vmatpush1.msra.mxu0 %v231
    %246 = vmatprep.subr.mxu0 0.0
    %247 = vmatpush1.msra.mxu0 %v232
    %248 = vmatprep.subr.mxu0 0.0
    %249 = vmatpush1.msra.mxu0 %v233
    %250 = vmatprep.subr.mxu0 0.0
    %251 = vmatpush1.msra.mxu0 %v234
    %252 = vmatprep.subr.mxu0 0.0
    %253 = vmatpush1.msra.mxu0 %v235
    %254 = vmatprep.subr.mxu0 0.0
    %255 = vmatpush1.msra.mxu0 %v236
    %256 = vmatprep.subr.mxu0 0.0
    %257 = vmatpush1.msra.mxu0 %v237
    %258 = vmatprep.subr.mxu0 0.0
    %259 = vmatpush1.msra.mxu0 %v238
    %260 = vmatprep.subr.mxu0 0.0
    %261 = vmatpush1.msra.mxu0 0.0
    %262 = vmatprep.subr.mxu0 0.0
    %263 = vmatpush1.msra.mxu0 0.0
    %264 = vmatprep.subr.mxu0 0.0
    %265 = vmatpush1.msra.mxu0 0.0
    %266 = vmatprep.subr.mxu0 0.0
    %267 = vmatpush1.msra.mxu0 0.0
    %268 = vmatprep.subr.mxu0 0.0
    %269 = vmatpush1.msra.mxu0 0.0
    %270 = vmatprep.subr.mxu0 0.0
    %271 = vmatpush1.msra.mxu0 0.0
    %272 = vmatprep.subr.mxu0 0.0
    %273 = vmatpush1.msra.mxu0 0.0
    %274 = vmatprep.subr.mxu0 0.0
    %275 = vmatpush1.msra.mxu0 0.0
    %276 = vmatprep.subr.mxu0 0.0
    %277 = vmatpush1.msra.mxu0 0.0
    %278 = vmatprep.subr.mxu0 0.0
    %279 = vmatpush1.msra.mxu0 0.0
    %280 = vmatprep.subr.mxu0 0.0
    %281 = vmatpush1.msra.mxu0 0.0
    %282 = vmatprep.subr.mxu0 0.0
    %283 = vmatpush1.msra.mxu0 0.0
    %284 = vmatprep.subr.mxu0 0.0
    %285 = vmatpush1.msra.mxu0 0.0
    %286 = vmatprep.subr.mxu0 0.0
    %287 = vmatpush1.msra.mxu0 0.0
    %288 = vmatprep.subr.mxu0 0.0
    %289 = vmatpush1.msra.mxu0 0.0
    %290 = vmatprep.subr.mxu0 0.0
    %291 = vmatpush1.msra.mxu0 0.0
    %292 = vmatprep.subr.mxu0 0.0
    %293 = vmatpush1.msra.mxu0 0.0
    %294 = vmatprep.subr.mxu0 0.0
    %295 = vmatpush1.msra.mxu0 0.0
    %296 = vmatprep.subr.mxu0 0.0
    %297 = vmatpush1.msra.mxu0 0.0
    %298 = vmatprep.subr.mxu0 0.0
    %299 = vmatpush1.msra.mxu0 0.0
    %300 = vmatprep.subr.mxu0 0.0
    %301 = vmatpush1.msra.mxu0 0.0
    %302 = vmatprep.subr.mxu0 0.0
    %303 = vmatpush1.msra.mxu0 0.0
    %304 = vmatprep.subr.mxu0 0.0
    %305 = vmatpush1.msra.mxu0 0.0
    %306 = vmatprep.subr.mxu0 0.0
    %307 = vmatpush1.msra.mxu0 0.0
    %308 = vmatprep.mubr.f32.mxu0 0.0
    %309 = vmatmul.mubr.f32.gmra.mrb[0].mxu0 %v242
    %v310 = vpop.f32.mrb[0].mxu0
    %v311 = vadd.f32 %v239, %v310
    %v312 = vpop.f32.mrb[0].mxu0
    %313 = vdwg.mxu0
    %vm314 = vcmask 122880
    %315 = vst.msk [vmem:[#allocation2] sm:$0x1] %vm314, %v311
    // Predicated region
    $region30: #{tpu_custom_call.1} parent=1 // pred_check
      _
    $region31: #{tpu_custom_call.1} parent=1 // pred_check_branch
      %317 = sbr.rel (0) target = $region33
    $region32: #{tpu_custom_call.1} parent=1 // pred_region
      %s319 = ssub.s32 16, 16
      %320 = vsyncadd [#allocation3], %s319
      %s322 = sshll.u32 [#allocation2], 4
      %s323 = int_to_ptr.vmem [resolvable:$true] %s322
      %325 = dma.vmem_to_hbm [thread:$0]  %s323, 16, %s7, [#allocation3]
    $region33: #{tpu_custom_call.1} parent=1 // pred_fallthru
      _
    // Predicated region
    $region34: #{tpu_custom_call.1} parent=1 // pred_check
      _
    $region35: #{tpu_custom_call.1} parent=1 // pred_check_branch
      %327 = sbr.rel (0) target = $region37
    $region36: #{tpu_custom_call.1} parent=1 // pred_region
      %328 = dma.done [#allocation3], 16
    $region37: #{tpu_custom_call.1} parent=1 // pred_fallthru
      _
    %329 = vsyncpa [#allocation3], 1

</llo_original>
